<compile_context>
chip_gen: v7x
topology: tpu7x:2x2x1
jax: 0.10.0
libtpu: 0.0.40
codegen_flags: <defaults>
</compile_context>

<pallas_src>
import jax
import jax.numpy as jnp
from jax.experimental import pallas as pl
from jax.experimental.pallas import tpu as pltpu

_LANE = 128
_MIB = 1024 * 1024


def _decoder_layer_kernel(x_ref, out_ref):
    # SublayerConnection returns x + dropout(x); dropout is identity at eval
    # time. The LayerNorm / attention / feed-forward intermediates are
    # discarded by the reference forward, so they are intentionally not
    # computed here (dead code in the PyTorch module).
    x = x_ref[...]
    out_ref[...] = x + x


def _vmem_capacity_bytes():
    try:
        return int(pltpu.get_tpu_info().vmem_capacity_bytes)
    except Exception:
        return 64 * _MIB  # conservative fallback: v7x-sized VMEM


def _pick_lane_dense_cols(total):
    """Largest lane-dense column count (multiple of 128) that divides `total`."""
    for c in (2048, 1024, 512, 256, _LANE):
        if total % c == 0:
            return c
    return None


def decoder_layer_forward(x, memory, src_mask, tgt_mask, a2=None, b2=None):
    """Pallas implementation of DecoderLayer.forward (eval mode).

    memory / src_mask / tgt_mask / a2 / b2 are accepted for signature parity
    but, exactly like in the reference module, never affect the returned value.
    """
    # TODO(synk): training-mode dropout (Bernoulli mask) is not implemented;
    # this kernel hard-codes eval-mode semantics (dropout == identity).
    del memory, src_mask, tgt_mask, a2, b2

    orig_shape = x.shape
    dtype = x.dtype
    itemsize = jnp.dtype(dtype).itemsize
    sub = max(8, 32 // itemsize)  # native sublane multiple for this dtype
    total = x.size

    # --- lane-dense 2-D view of the flat element stream --------------------
    flat = x.reshape(-1)
    C = _pick_lane_dense_cols(total)
    pad = 0
    if C is None:
        # Pad up to a multiple of 128 so stores stay unmasked / lane-dense;
        # the (elementwise-irrelevant) padding is sliced off afterwards.
        C = _LANE
        pad = (-total) % C
        flat = jnp.pad(flat, (0, pad))
    R = flat.size // C
    x2d = flat.reshape(R, C)

    # --- tile sizing --------------------------------------------------------
    vmem_cap = _vmem_capacity_bytes()
    block_budget = 8 * _MIB if vmem_cap <= 64 * _MIB else 24 * _MIB
    bytes_per_row = C * itemsize
    tm = max(sub, (block_budget // bytes_per_row) // sub * sub)

    if R <= tm:
        if R > 2 * sub:
            # Keep >= 2 grid blocks so the "parallel" row axis can shard across
            # both TensorCores on v7x instead of idling one of them.
            half = (R + 1) // 2
            tm = ((half + sub - 1) // sub) * sub
        else:
            tm = R  # tiny input: a single full-extent block
    grid = pl.cdiv(R, tm)  # partial tail block is handled (masked) by Pallas

    block_bytes = tm * bytes_per_row
    # Double-buffered input + output tiles plus slack; never the full physical
    # VMEM (leave headroom for Mosaic internal scratch / pipeline semaphores).
    vmem_limit = min(int(0.75 * vmem_cap), 4 * block_bytes + 4 * _MIB)
    vmem_limit = max(vmem_limit, 16 * _MIB)

    out2d = pl.pallas_call(
        _decoder_layer_kernel,
        out_shape=jax.ShapeDtypeStruct((R, C), dtype),
        grid_spec=pltpu.PrefetchScalarGridSpec(
            num_scalar_prefetch=0,
            grid=(grid,),
            in_specs=[pl.BlockSpec((tm, C), lambda i: (i, 0))],
            out_specs=pl.BlockSpec((tm, C), lambda i: (i, 0)),
        ),
        compiler_params=pltpu.CompilerParams(
            dimension_semantics=("parallel",),  # shard rows across TCs (v7x)
            vmem_limit_bytes=int(vmem_limit),
        ),
        cost_estimate=pl.CostEstimate(
            flops=R * C,
            bytes_accessed=2 * R * C * itemsize,
            transcendentals=0,
        ),
        input_output_aliases={0: 0},  # read-then-overwrite: reuse x's buffer
    )(x2d)

    if pad:
        out2d = out2d.reshape(-1)[:total]
    return out2d.reshape(orig_shape)


if __name__ == "__main__":
    key = jax.random.PRNGKey(0)
    k_x, k_mem = jax.random.split(key)

    batch, tgt_len, src_len, d_model = 2, 8, 8, 32

    x = jax.random.normal(k_x, (batch, tgt_len, d_model), dtype=jnp.float32)
    memory = jax.random.normal(k_mem, (batch, src_len, d_model), dtype=jnp.float32)
    src_mask = jnp.ones((batch, 1, src_len), dtype=jnp.float32)
    tgt_mask = jnp.tril(jnp.ones((tgt_len, tgt_len), dtype=jnp.float32))[None]

    # LayerNorm parameters (nn.Parameter(torch.ones(features))) — unused by the
    # reference forward's returned value, kept for signature parity.
    a2 = jnp.ones((d_model,), dtype=jnp.float32)
    b2 = jnp.ones((d_model,), dtype=jnp.float32)

    out = decoder_layer_forward(x, memory, src_mask, tgt_mask, a2, b2)
    out = jax.block_until_ready(out)

    # Reference (eval-mode dropout => identity): output == x + x.
    ref = x + x
    assert out.shape == x.shape
    assert jnp.allclose(out, ref, atol=1e-6), "mismatch vs. reference semantics"

    print("KERNEL_OK")
</pallas_src>

<mosaic_0001>
module attributes {stable_mosaic.version = 11 : i64} {
  func.func @_decoder_layer_kernel(%arg0: i32, %arg1: memref<1x512xf32, #tpu.memory_space<vmem>>, %arg2: memref<1x512xf32, #tpu.memory_space<vmem>>) attributes {dimension_semantics = [#tpu.dimension_semantics<parallel>], iteration_bounds = array<i64: 1>, scalar_prefetch = 0 : i64, scratch_operands = 0 : i64, tpu.core_type = #tpu.core_type<tc>, window_params = [{transform_indices = @transform_0, window_bounds = array<i64: 1, 512>}, {transform_indices = @transform_1, window_bounds = array<i64: 1, 512>}]} {
    %c0 = arith.constant 0 : index
    %c0_0 = arith.constant 0 : index
    %0 = vector.load %arg1[%c0, %c0_0] : memref<1x512xf32, #tpu.memory_space<vmem>>, vector<1x512xf32>
    %1 = arith.addf %0, %0 : vector<1x512xf32>
    %c0_1 = arith.constant 0 : index
    %c0_2 = arith.constant 0 : index
    %2 = vector.load %arg2[%c0_1, %c0_2] : memref<1x512xf32, #tpu.memory_space<vmem>>, vector<1x512xf32>
    tpu.vector_store %arg2[%c0_1, %c0_2], %1 {strides = array<i32>} : memref<1x512xf32, #tpu.memory_space<vmem>>, vector<1x512xf32>,
    return
  }
  func.func @transform_0(%arg0: i32) -> (i32, i32) {
    %c0_i32 = arith.constant 0 : i32
    %c0_i32_0 = arith.constant 0 : i32
    return %arg0, %c0_i32 : i32, i32
  }
  func.func @transform_1(%arg0: i32) -> (i32, i32) {
    %c0_i32 = arith.constant 0 : i32
    %c0_i32_0 = arith.constant 0 : i32
    return %arg0, %c0_i32 : i32, i32
  }
}

</mosaic_0001>

<llo_original>
// kernel: tpu_custom_call.1
$region0: #{tpu_custom_call.1}
  #allocation0 [shape = 'u32[]', space=smem, size = 0x4, offset = 0x4, fixed_abs, tag = 'smem constant byte address 0x4 - core index']
  #allocation1 [shape = 'u32[144,128]{1,0:T(1,128)}', space=vmem, size = 0x12000, scoped, tag = 'internal scratch']
  %s0 = inlined_call_operand.hbm [shape: f32[1,512], index: 0, kind: input, shape index: {}, may-alias: {0,1}]
  %s1 = inlined_call_operand.hbm [shape: f32[1,512], index: 1, kind: output, shape index: {}, may-alias: {0,1}]
  %s2 = sld [smem:[#allocation0]]
  $region18: #{tpu_custom_call.1} parent=0
    _
  %s4 = ssub.s32 1, %s2
  %s5 = scalar_select 0, %s4, %s2
  $region1: #{tpu_custom_call.1} parent=0
    #allocation2 [shape = 'u8[2048]{0}', space=vmem, size = 0x800, scoped, tag = 'input window, operand 0, single buffered']
    #allocation3 [shape = 's32[1]{0}', space=sflag, size = 0x4, scoped, tag = 'scoped memory for tpu_custom_call.1']
    #allocation4 [shape = 's32[1]{0}', space=sflag, size = 0x4, scoped, tag = 'scoped memory for tpu_custom_call.1']
    #allocation5 [shape = 'u8[2048]{0}', space=vmem, size = 0x800, scoped, tag = 'output window, operand 0, single buffered']
    %6 = vsyncpa [#allocation3], 0
    %7 = vsyncpa [#allocation4], 0
    // Predicated region
    $region2: #{tpu_custom_call.1} parent=1 // pred_check
      _
    $region3: #{tpu_custom_call.1} parent=1 // pred_check_branch
      %9 = sbr.rel (0) target = $region5
    $region4: #{tpu_custom_call.1} parent=1 // pred_region
      %s11 = ssub.s32 64, 64
      %12 = vsyncadd [#allocation3], %s11
      %s14 = sshll.u32 [#allocation2], 4
      %s15 = int_to_ptr.vmem [resolvable:$true] %s14
      %17 = dma.hbm_to_vmem [thread:$0]  %s0, 64, %s15, [#allocation3]
    $region5: #{tpu_custom_call.1} parent=1 // pred_fallthru
      _
    // Predicated region
    $region6: #{tpu_custom_call.1} parent=1 // pred_check
      _
    $region7: #{tpu_custom_call.1} parent=1 // pred_check_branch
      %19 = sbr.rel (0) target = $region9
    $region8: #{tpu_custom_call.1} parent=1 // pred_region
      %20 = dma.done [#allocation3], 64
    $region9: #{tpu_custom_call.1} parent=1 // pred_fallthru
      _
    %v21 = vld [vmem:[#allocation2] sm:$0xf]
    %v22 = vadd.f32 %v21, %v21
    %v23 = vlaneseq
    %vm24 = vcmp.ge.s32.totalorder %v23, 0
    %vm25 = vcmp.lt.s32.totalorder %v23, 512
    %vm26 = vmand %vm24, %vm25
    %27 = vst.msk [vmem:[#allocation5] sm:$0xf] %vm26, %v22
    // Predicated region
    $region10: #{tpu_custom_call.1} parent=1 // pred_check
      _
    $region11: #{tpu_custom_call.1} parent=1 // pred_check_branch
      %29 = sbr.rel (0) target = $region13
    $region12: #{tpu_custom_call.1} parent=1 // pred_region
      %s31 = ssub.s32 64, 64
      %32 = vsyncadd [#allocation4], %s31
      %s34 = sshll.u32 [#allocation5], 4
      %s35 = int_to_ptr.vmem [resolvable:$true] %s34
      %37 = dma.vmem_to_hbm [thread:$0]  %s35, 64, %s1, [#allocation4]
    $region13: #{tpu_custom_call.1} parent=1 // pred_fallthru
      _
    // Predicated region
    $region14: #{tpu_custom_call.1} parent=1 // pred_check
      _
    $region15: #{tpu_custom_call.1} parent=1 // pred_check_branch
      %39 = sbr.rel (0) target = $region17
    $region16: #{tpu_custom_call.1} parent=1 // pred_region
      %40 = dma.done [#allocation4], 64
    $region17: #{tpu_custom_call.1} parent=1 // pred_fallthru
      _
    %41 = vsyncpa [#allocation3], 1
    %42 = vsyncpa [#allocation4], 1

</llo_original>
